<compile_context>
chip_gen: v7x
topology: tpu7x:2x2x1
jax: 0.10.0
libtpu: 0.0.40
codegen_flags: <defaults>
</compile_context>

<pallas_src>
import functools

import numpy as np
import jax
import jax.numpy as jnp
from jax.experimental import pallas as pl
from jax.experimental.pallas import tpu as pltpu


_NEG = -1.0e30  # additive "invalid anchor" value (finite: no inf/NaN hazards)


def _anchor_addmasks(H, W, sizes):
    """(len(sizes), H*W) f32: 0.0 at top-left anchors of s x s blocks, -1e30 else."""
    hh, ww = np.meshgrid(np.arange(H), np.arange(W), indexing="ij")
    fh, fw = hh.reshape(-1), ww.reshape(-1)
    rows = [np.where((fh % s == 0) & (fw % s == 0), 0.0, _NEG).astype(np.float32)
            for s in sizes]
    return np.stack(rows, axis=0)


def _gate_kernel(x_ref, m_ref, w1t_ref, b1_ref, w2t_ref, b2_ref, o_ref, *, w, hw):
    # x_ref: (Bt, C, HW) row-major-flattened spatial on the lane axis.
    x3 = x_ref[...].astype(jnp.float32)                        # (Bt, C, HW)
    mm = m_ref[...]                                            # (3, HW) additive masks

    def shl(v, k):
        # Lane-left rotation by k (XLU vrot). Wrapped lanes never coincide with a
        # valid anchor, so they are killed by the additive mask before the max.
        return pltpu.roll(v, shift=hw - k, axis=2)

    def anchor_max(sums, k):                                   # (Bt, C, HW) -> (Bt, C)
        return jnp.max(sums + mm[k], axis=-1)

    # Hierarchical 2x2 block sums (avg-of-avg is exact), anchored at the
    # top-left lane of each block.
    hs = x3 + shl(x3, 1)
    s2 = hs + shl(hs, w)                                       # 2x2 block sums
    m2 = (1.0 / 4.0) * anchor_max(s2, 0)
    h2 = s2 + shl(s2, 2)
    s4 = h2 + shl(h2, 2 * w)                                   # 4x4 block sums
    m4 = (1.0 / 16.0) * anchor_max(s4, 1)
    h3 = s4 + shl(s4, 4)
    s8 = h3 + shl(h3, 4 * w)                                   # 8x8 block sums
    m8 = (1.0 / 64.0) * anchor_max(s8, 2)

    mean_x = jnp.mean(x3, axis=-1)                             # (Bt, C)
    max_x = jnp.max(x3, axis=-1)                               # (Bt, C)

    # Batched gating MLP: one (5*Bt, C) matrix -> 2 MXU matmuls instead of 10.
    bt = x3.shape[0]
    pooled = jnp.concatenate([mean_x, m2, m4, m8, max_x], axis=0)     # (5*Bt, C)
    h = jnp.maximum(
        jnp.dot(pooled, w1t_ref[...], preferred_element_type=jnp.float32)
        + b1_ref[...], 0.0)                                            # (5*Bt, Ch)
    z = jnp.dot(h, w2t_ref[...], preferred_element_type=jnp.float32) + b2_ref[...]

    # All four 'avg' pools equal the global mean of x exactly -> weight 4.
    att = (4.0 * z[0:bt] + z[bt:2 * bt] + z[2 * bt:3 * bt]
           + z[3 * bt:4 * bt] + z[4 * bt:5 * bt])              # (Bt, C)
    gate = jax.nn.sigmoid(att)
    o_ref[...] = (x3 * gate[:, :, None]).astype(o_ref.dtype)


def _vmem_limit_bytes():
    """Generation-aware scoped-VMEM request (48 MiB on v7x, 64 MiB on v5e/v6e)."""
    cap = 64 * 2**20
    try:
        cap = int(getattr(pltpu.get_tpu_info(), "vmem_capacity_bytes", cap))
    except Exception:
        pass
    return int(min(64 * 2**20, (cap * 3) // 4))


def _pick_batch_tile(B, C, HW, itemsize, vmem_limit):
    # Per-image resident set: 2x double-buffered input + 2x output tiles at the
    # I/O dtype, plus ~5 live f32 temps of size C*HW from the roll/add pyramid.
    per_image = C * HW * (4 * itemsize + 5 * 4)
    budget = int(0.55 * vmem_limit)
    bt = max(1, budget // max(1, per_image))
    if B >= 2:
        bt = min(bt, pl.cdiv(B, 2))   # >= 2 grid steps -> both TCs on v7x
    return int(min(bt, B))


def multiscale_channel_gate(x, w1, b1, w2, b2):
    B, C, H, W = x.shape
    assert H % 8 == 0 and W % 8 == 0, "spatial dims must be divisible by 8"
    HW = H * W
    Ch = w1.shape[0]
    itemsize = jnp.dtype(x.dtype).itemsize

    vmem_limit = _vmem_limit_bytes()
    bt = _pick_batch_tile(B, C, HW, itemsize, vmem_limit)
    grid_n = pl.cdiv(B, bt)
    B_pad = grid_n * bt

    x_flat = x.reshape(B, C, HW)                               # lane-dense I/O layout
    if B_pad != B:                                             # pad awkward batch sizes
        x_flat = jnp.concatenate(
            [x_flat, jnp.zeros((B_pad - B, C, HW), x.dtype)], axis=0)

    masks = jnp.asarray(_anchor_addmasks(H, W, (2, 4, 8)))     # (3, HW) f32 additive
    w1t = jnp.transpose(w1)                                    # (C, Ch)
    w2t = jnp.transpose(w2)                                    # (Ch, C)
    b1r = b1.reshape(1, Ch)
    b2r = b2.reshape(1, C)

    kernel = functools.partial(_gate_kernel, w=W, hw=HW)

    flops = int(16 * B_pad * C * HW + 20 * B_pad * C * Ch)
    bytes_accessed = int(2 * B_pad * C * HW * itemsize
                         + (3 * HW + 2 * C * Ch + C + Ch) * 4)

    out_flat = pl.pallas_call(
        kernel,
        out_shape=jax.ShapeDtypeStruct((B_pad, C, HW), x.dtype),
        grid=(grid_n,),
        in_specs=[
            pl.BlockSpec((bt, C, HW), lambda b: (b, 0, 0)),    # x (bt images / step)
            pl.BlockSpec((3, HW), lambda b: (0, 0)),           # additive anchor masks
            pl.BlockSpec((C, Ch), lambda b: (0, 0)),           # w1^T
            pl.BlockSpec((1, Ch), lambda b: (0, 0)),           # b1
            pl.BlockSpec((Ch, C), lambda b: (0, 0)),           # w2^T
            pl.BlockSpec((1, C), lambda b: (0, 0)),            # b2
        ],
        out_specs=pl.BlockSpec((bt, C, HW), lambda b: (b, 0, 0)),
        compiler_params=pltpu.CompilerParams(
            dimension_semantics=("parallel",),                 # batch tiles independent
            vmem_limit_bytes=vmem_limit,
        ),
        cost_estimate=pl.CostEstimate(
            flops=flops, transcendentals=int(B_pad * C),
            bytes_accessed=bytes_accessed),
    )(x_flat, masks, w1t, b1r, w2t, b2r)
    return out_flat[:B].reshape(B, C, H, W)


def _reference(x, w1, b1, w2, b2):
    """Pure-JAX mirror of the PyTorch forward."""
    B, C, H, W = x.shape

    def block_avg(a, s):
        return a.reshape(B, C, H // s, s, W // s, s).mean(axis=(3, 5))

    def upsample(a, s):
        return jnp.repeat(jnp.repeat(a, s, axis=2), s, axis=3)

    scales = [upsample(block_avg(x, s), s) for s in (2, 4, 8)] + [x]

    def mlp(v):  # (B, C)
        h = jnp.maximum(v @ w1.T + b1, 0.0)
        return h @ w2.T + b2

    att = jnp.zeros((B, C), jnp.float32)
    for pool in ("avg", "max"):
        for sc in scales:
            p = sc.mean(axis=(2, 3)) if pool == "avg" else sc.max(axis=(2, 3))
            att = att + mlp(p)
    gate = jax.nn.sigmoid(att)[:, :, None, None]
    return x * gate


if __name__ == "__main__":
    B, C, H, W = 2, 32, 16, 16
    reduction_ratio = 16
    Ch = C // reduction_ratio  # hidden width of the gating MLP

    key = jax.random.PRNGKey(0)
    kx, k1, k2, k3, k4 = jax.random.split(key, 5)
    x = jax.random.normal(kx, (B, C, H, W), jnp.float32)
    w1 = jax.random.normal(k1, (Ch, C), jnp.float32) * 0.2   # Linear(C -> Ch) weight
    b1 = jax.random.normal(k2, (Ch,), jnp.float32) * 0.1
    w2 = jax.random.normal(k3, (C, Ch), jnp.float32) * 0.2   # Linear(Ch -> C) weight
    b2 = jax.random.normal(k4, (C,), jnp.float32) * 0.1

    out = multiscale_channel_gate(x, w1, b1, w2, b2)
    out = jax.block_until_ready(out)

    ref = _reference(x, w1, b1, w2, b2)
    assert out.shape == x.shape and out.dtype == x.dtype
    if not jnp.allclose(out, ref, atol=1e-4, rtol=1e-4):
        raise AssertionError("Pallas kernel output does not match reference")
    print("KERNEL_OK")
</pallas_src>

<mosaic_0001>
module attributes {stable_mosaic.version = 11 : i64} {
  func.func @_gate_kernel(%arg0: i32, %arg1: memref<1x32x256xf32, #tpu.memory_space<vmem>>, %arg2: memref<3x256xf32, #tpu.memory_space<vmem>>, %arg3: memref<32x2xf32, #tpu.memory_space<vmem>>, %arg4: memref<1x2xf32, #tpu.memory_space<vmem>>, %arg5: memref<2x32xf32, #tpu.memory_space<vmem>>, %arg6: memref<1x32xf32, #tpu.memory_space<vmem>>, %arg7: memref<1x32x256xf32, #tpu.memory_space<vmem>>) attributes {dimension_semantics = [#tpu.dimension_semantics<parallel>], iteration_bounds = array<i64: 2>, scalar_prefetch = 0 : i64, scratch_operands = 0 : i64, tpu.core_type = #tpu.core_type<tc>, window_params = [{transform_indices = @transform_0, window_bounds = array<i64: 1, 32, 256>}, {pipeline_mode = #tpu.pipeline_mode<synchronous>, transform_indices = @transform_1, window_bounds = array<i64: 3, 256>}, {pipeline_mode = #tpu.pipeline_mode<synchronous>, transform_indices = @transform_2, window_bounds = array<i64: 32, 2>}, {pipeline_mode = #tpu.pipeline_mode<synchronous>, transform_indices = @transform_3, window_bounds = array<i64: 1, 2>}, {pipeline_mode = #tpu.pipeline_mode<synchronous>, transform_indices = @transform_4, window_bounds = array<i64: 2, 32>}, {pipeline_mode = #tpu.pipeline_mode<synchronous>, transform_indices = @transform_5, window_bounds = array<i64: 1, 32>}, {transform_indices = @transform_6, window_bounds = array<i64: 1, 32, 256>}]} {
    %c0 = arith.constant 0 : index
    %c0_0 = arith.constant 0 : index
    %c0_1 = arith.constant 0 : index
    %0 = vector.load %arg1[%c0, %c0_0, %c0_1] : memref<1x32x256xf32, #tpu.memory_space<vmem>>, vector<1x32x256xf32>
    %c0_2 = arith.constant 0 : index
    %c0_3 = arith.constant 0 : index
    %1 = vector.load %arg2[%c0_2, %c0_3] : memref<3x256xf32, #tpu.memory_space<vmem>>, vector<3x256xf32>
    %c255_i32 = arith.constant 255 : i32
    %2 = tpu.dynamic_rotate %0 by %c255_i32 dim 2 : vector<1x32x256xf32>, i32 -> vector<1x32x256xf32>
    %3 = arith.addf %0, %2 : vector<1x32x256xf32>
    %c240_i32 = arith.constant 240 : i32
    %4 = tpu.dynamic_rotate %3 by %c240_i32 dim 2 : vector<1x32x256xf32>, i32 -> vector<1x32x256xf32>
    %5 = arith.addf %3, %4 : vector<1x32x256xf32>
    %6 = vector.extract_strided_slice %1 {offsets = [0, 0], sizes = [1, 256], strides = [1, 1]} : vector<3x256xf32> to vector<1x256xf32>
    %7 = vector.shape_cast %6 : vector<1x256xf32> to vector<256xf32>
    %8 = vector.shape_cast %7 : vector<256xf32> to vector<1x1x256xf32>
    %9 = vector.broadcast %8 : vector<1x1x256xf32> to vector<1x32x256xf32>
    %10 = arith.addf %5, %9 : vector<1x32x256xf32>
    %cst = arith.constant dense<0xFF800000> : vector<1x32xf32>
    %11 = vector.multi_reduction <maximumf>, %10, %cst [2] : vector<1x32x256xf32> to vector<1x32xf32>
    %cst_4 = arith.constant 2.500000e-01 : f32
    %12 = vector.broadcast %cst_4 : f32 to vector<1x32xf32>
    %13 = arith.mulf %12, %11 : vector<1x32xf32>
    %c254_i32 = arith.constant 254 : i32
    %14 = tpu.dynamic_rotate %5 by %c254_i32 dim 2 : vector<1x32x256xf32>, i32 -> vector<1x32x256xf32>
    %15 = arith.addf %5, %14 : vector<1x32x256xf32>
    %c224_i32 = arith.constant 224 : i32
    %16 = tpu.dynamic_rotate %15 by %c224_i32 dim 2 : vector<1x32x256xf32>, i32 -> vector<1x32x256xf32>
    %17 = arith.addf %15, %16 : vector<1x32x256xf32>
    %18 = vector.extract_strided_slice %1 {offsets = [1, 0], sizes = [1, 256], strides = [1, 1]} : vector<3x256xf32> to vector<1x256xf32>
    %19 = vector.shape_cast %18 : vector<1x256xf32> to vector<256xf32>
    %20 = vector.shape_cast %19 : vector<256xf32> to vector<1x1x256xf32>
    %21 = vector.broadcast %20 : vector<1x1x256xf32> to vector<1x32x256xf32>
    %22 = arith.addf %17, %21 : vector<1x32x256xf32>
    %cst_5 = arith.constant dense<0xFF800000> : vector<1x32xf32>
    %23 = vector.multi_reduction <maximumf>, %22, %cst_5 [2] : vector<1x32x256xf32> to vector<1x32xf32>
    %cst_6 = arith.constant 6.250000e-02 : f32
    %24 = vector.broadcast %cst_6 : f32 to vector<1x32xf32>
    %25 = arith.mulf %24, %23 : vector<1x32xf32>
    %c252_i32 = arith.constant 252 : i32
    %26 = tpu.dynamic_rotate %17 by %c252_i32 dim 2 : vector<1x32x256xf32>, i32 -> vector<1x32x256xf32>
    %27 = arith.addf %17, %26 : vector<1x32x256xf32>
    %c192_i32 = arith.constant 192 : i32
    %28 = tpu.dynamic_rotate %27 by %c192_i32 dim 2 : vector<1x32x256xf32>, i32 -> vector<1x32x256xf32>
    %29 = arith.addf %27, %28 : vector<1x32x256xf32>
    %30 = vector.extract_strided_slice %1 {offsets = [2, 0], sizes = [1, 256], strides = [1, 1]} : vector<3x256xf32> to vector<1x256xf32>
    %31 = vector.shape_cast %30 : vector<1x256xf32> to vector<256xf32>
    %32 = vector.shape_cast %31 : vector<256xf32> to vector<1x1x256xf32>
    %33 = vector.broadcast %32 : vector<1x1x256xf32> to vector<1x32x256xf32>
    %34 = arith.addf %29, %33 : vector<1x32x256xf32>
    %cst_7 = arith.constant dense<0xFF800000> : vector<1x32xf32>
    %35 = vector.multi_reduction <maximumf>, %34, %cst_7 [2] : vector<1x32x256xf32> to vector<1x32xf32>
    %cst_8 = arith.constant 1.562500e-02 : f32
    %36 = vector.broadcast %cst_8 : f32 to vector<1x32xf32>
    %37 = arith.mulf %36, %35 : vector<1x32xf32>
    %cst_9 = arith.constant dense<0.000000e+00> : vector<1x32xf32>
    %38 = vector.multi_reduction <add>, %0, %cst_9 [2] : vector<1x32x256xf32> to vector<1x32xf32>
    %cst_10 = arith.constant 2.560000e+02 : f32
    %39 = vector.broadcast %cst_10 : f32 to vector<1x32xf32>
    %40 = arith.divf %38, %39 : vector<1x32xf32>
    %cst_11 = arith.constant dense<0xFF800000> : vector<1x32xf32>
    %41 = vector.multi_reduction <maximumf>, %0, %cst_11 [2] : vector<1x32x256xf32> to vector<1x32xf32>
    %42 = tpu.concatenate %40, %13, %25, %37, %41 in 0 : vector<1x32xf32>, vector<1x32xf32>, vector<1x32xf32>, vector<1x32xf32>, vector<1x32xf32> -> vector<5x32xf32>
    %c0_12 = arith.constant 0 : index
    %c0_13 = arith.constant 0 : index
    %43 = vector.load %arg3[%c0_12, %c0_13] : memref<32x2xf32, #tpu.memory_space<vmem>>, vector<32x2xf32>
    %cst_14 = arith.constant dense<0.000000e+00> : vector<5x2xf32>
    %44 = tpu.matmul %42, %43, %cst_14 {dimension_numbers = #tpu.dot_dimension_numbers<[1], [0], [0], [1], [0, 0, 1, 1], [], []>} : vector<5x32xf32>, vector<32x2xf32>, vector<5x2xf32> -> vector<5x2xf32>
    %c0_15 = arith.constant 0 : index
    %c0_16 = arith.constant 0 : index
    %45 = vector.load %arg4[%c0_15, %c0_16] : memref<1x2xf32, #tpu.memory_space<vmem>>, vector<1x2xf32>
    %46 = vector.broadcast %45 : vector<1x2xf32> to vector<5x2xf32>
    %47 = arith.addf %44, %46 : vector<5x2xf32>
    %cst_17 = arith.constant 0.000000e+00 : f32
    %48 = vector.broadcast %cst_17 : f32 to vector<5x2xf32>
    %49 = arith.maximumf %47, %48 : vector<5x2xf32>
    %c0_18 = arith.constant 0 : index
    %c0_19 = arith.constant 0 : index
    %50 = vector.load %arg5[%c0_18, %c0_19] : memref<2x32xf32, #tpu.memory_space<vmem>>, vector<2x32xf32>
    %cst_20 = arith.constant dense<0.000000e+00> : vector<5x32xf32>
    %51 = tpu.matmul %49, %50, %cst_20 {dimension_numbers = #tpu.dot_dimension_numbers<[1], [0], [0], [1], [0, 0, 1, 1], [], []>} : vector<5x2xf32>, vector<2x32xf32>, vector<5x32xf32> -> vector<5x32xf32>
    %c0_21 = arith.constant 0 : index
    %c0_22 = arith.constant 0 : index
    %52 = vector.load %arg6[%c0_21, %c0_22] : memref<1x32xf32, #tpu.memory_space<vmem>>, vector<1x32xf32>
    %53 = vector.broadcast %52 : vector<1x32xf32> to vector<5x32xf32>
    %54 = arith.addf %51, %53 : vector<5x32xf32>
    %55 = vector.extract_strided_slice %54 {offsets = [0, 0], sizes = [1, 32], strides = [1, 1]} : vector<5x32xf32> to vector<1x32xf32>
    %cst_23 = arith.constant 4.000000e+00 : f32
    %56 = vector.broadcast %cst_23 : f32 to vector<1x32xf32>
    %57 = arith.mulf %56, %55 : vector<1x32xf32>
    %58 = vector.extract_strided_slice %54 {offsets = [1, 0], sizes = [1, 32], strides = [1, 1]} : vector<5x32xf32> to vector<1x32xf32>
    %59 = arith.addf %57, %58 : vector<1x32xf32>
    %60 = vector.extract_strided_slice %54 {offsets = [2, 0], sizes = [1, 32], strides = [1, 1]} : vector<5x32xf32> to vector<1x32xf32>
    %61 = arith.addf %59, %60 : vector<1x32xf32>
    %62 = vector.extract_strided_slice %54 {offsets = [3, 0], sizes = [1, 32], strides = [1, 1]} : vector<5x32xf32> to vector<1x32xf32>
    %63 = arith.addf %61, %62 : vector<1x32xf32>
    %64 = vector.extract_strided_slice %54 {offsets = [4, 0], sizes = [1, 32], strides = [1, 1]} : vector<5x32xf32> to vector<1x32xf32>
    %65 = arith.addf %63, %64 : vector<1x32xf32>
    %66 = arith.negf %65 : vector<1x32xf32>
    %67 = math.exp %66 : vector<1x32xf32>
    %cst_24 = arith.constant 1.000000e+00 : f32
    %68 = vector.broadcast %cst_24 : f32 to vector<1x32xf32>
    %69 = arith.addf %68, %67 : vector<1x32xf32>
    %70 = arith.divf %68, %69 : vector<1x32xf32>
    %71 = vector.shape_cast %70 : vector<1x32xf32> to vector<1x32x1xf32>
    %72 = vector.broadcast %71 : vector<1x32x1xf32> to vector<1x32x256xf32>
    %73 = arith.mulf %0, %72 : vector<1x32x256xf32>
    %c0_25 = arith.constant 0 : index
    %c0_26 = arith.constant 0 : index
    %c0_27 = arith.constant 0 : index
    %74 = vector.load %arg7[%c0_25, %c0_26, %c0_27] : memref<1x32x256xf32, #tpu.memory_space<vmem>>, vector<1x32x256xf32>
    tpu.vector_store %arg7[%c0_25, %c0_26, %c0_27], %73 {strides = array<i32>} : memref<1x32x256xf32, #tpu.memory_space<vmem>>, vector<1x32x256xf32>,
    return
  }
  func.func @transform_0(%arg0: i32) -> (i32, i32, i32) {
    %c0_i32 = arith.constant 0 : i32
    %c0_i32_0 = arith.constant 0 : i32
    %c0_i32_1 = arith.constant 0 : i32
    return %arg0, %c0_i32, %c0_i32_0 : i32, i32, i32
  }
  func.func @transform_1(%arg0: i32) -> (i32, i32) {
    %c0_i32 = arith.constant 0 : i32
    %c0_i32_0 = arith.constant 0 : i32
    %c0_i32_1 = arith.constant 0 : i32
    return %c0_i32, %c0_i32_0 : i32, i32
  }
  func.func @transform_2(%arg0: i32) -> (i32, i32) {
    %c0_i32 = arith.constant 0 : i32
    %c0_i32_0 = arith.constant 0 : i32
    %c0_i32_1 = arith.constant 0 : i32
    return %c0_i32, %c0_i32_0 : i32, i32
  }
  func.func @transform_3(%arg0: i32) -> (i32, i32) {
    %c0_i32 = arith.constant 0 : i32
    %c0_i32_0 = arith.constant 0 : i32
    %c0_i32_1 = arith.constant 0 : i32
    return %c0_i32, %c0_i32_0 : i32, i32
  }
  func.func @transform_4(%arg0: i32) -> (i32, i32) {
    %c0_i32 = arith.constant 0 : i32
    %c0_i32_0 = arith.constant 0 : i32
    %c0_i32_1 = arith.constant 0 : i32
    return %c0_i32, %c0_i32_0 : i32, i32
  }
  func.func @transform_5(%arg0: i32) -> (i32, i32) {
    %c0_i32 = arith.constant 0 : i32
    %c0_i32_0 = arith.constant 0 : i32
    %c0_i32_1 = arith.constant 0 : i32
    return %c0_i32, %c0_i32_0 : i32, i32
  }
  func.func @transform_6(%arg0: i32) -> (i32, i32, i32) {
    %c0_i32 = arith.constant 0 : i32
    %c0_i32_0 = arith.constant 0 : i32
    %c0_i32_1 = arith.constant 0 : i32
    return %arg0, %c0_i32, %c0_i32_0 : i32, i32, i32
  }
}

</mosaic_0001>

<llo_original>
// kernel: tpu_custom_call.1
$region0: #{tpu_custom_call.1}
  #allocation0 [shape = 'u32[]', space=smem, size = 0x4, offset = 0x4, fixed_abs, tag = 'smem constant byte address 0x4 - core index']
  #allocation1 [shape = 'u32[144,128]{1,0:T(1,128)}', space=vmem, size = 0x12000, scoped, tag = 'internal scratch']
  %s0 = inlined_call_operand.hbm [shape: f32[2,32,256], index: 0, kind: input, shape index: {}]
  %s1 = inlined_call_operand.vmem [shape: f32[3,256], index: 1, kind: input, shape index: {}]
  %s2 = inlined_call_operand.vmem [shape: f32[32,2], index: 2, kind: input, shape index: {}]
  %s3 = inlined_call_operand.vmem [shape: f32[1,2], index: 3, kind: input, shape index: {}]
  %s4 = inlined_call_operand.vmem [shape: f32[2,32], index: 4, kind: input, shape index: {}]
  %s5 = inlined_call_operand.vmem [shape: f32[1,32], index: 5, kind: input, shape index: {}]
  %s6 = inlined_call_operand.hbm [shape: f32[2,32,256], index: 6, kind: output, shape index: {}]
  %s7 = sld [smem:[#allocation0]]
  $region61: #{tpu_custom_call.1} parent=0
    _
  %s9 = ssub.s32 1, %s7
  %s10 = scalar_select 0, %s9, %s7
  $region1: #{tpu_custom_call.1} parent=0
    #allocation2 [shape = 'u8[65536]{0}', space=vmem, size = 0x10000, scoped, tag = 'input window, operand 0']
    #allocation3 [shape = 's32[2]{0}', space=sflag, size = 0x8, scoped, tag = 'scoped memory for tpu_custom_call.1']
    #allocation4 [shape = 's32[2]{0}', space=sflag, size = 0x8, scoped, tag = 'scoped memory for tpu_custom_call.1']
    #allocation5 [shape = 'u8[65536]{0}', space=vmem, size = 0x10000, scoped, tag = 'output window, operand 0']
    %11 = vsyncpa [#allocation3], 0
    %s12 = scalar_lea.sflag [#allocation3], 1
    %13 = vsyncpa %s12, 0
    %14 = vsyncpa [#allocation4], 0
    %s15 = scalar_lea.sflag [#allocation4], 1
    %16 = vsyncpa %s15, 0
    loop: start=0, step=1, limit=4
    $region2: #{tpu_custom_call.1} parent=1 // loop_pre_header
      _
    $region3: #{tpu_custom_call.1} parent=1 // loop_header
      %s18 = sphi 0, %s22
      %p19 = scmp.ge.s32.totalorder %s18, 4
      %s28 = sphi 0, %s30
      %s31 = sphi 0, %s28
      %s32 = sphi 0, %s31
      %s48 = sphi 0, %s32
      %s52 = sphi 0, %s52
      %s54 = sphi 0, %s52
      %s55 = sphi 0, %s54
      %s69 = sphi 0, %s55
      %s73 = sphi 0, %s73
      %s75 = sphi 0, %s73
      %s76 = sphi 0, %s75
      %s90 = sphi 0, %s76
      %s94 = sphi 0, %s94
      %s96 = sphi 0, %s94
      %s97 = sphi 0, %s96
      %s111 = sphi 0, %s97
      %s115 = sphi 0, %s115
      %s117 = sphi 0, %s115
      %s118 = sphi 0, %s117
      %s132 = sphi 0, %s118
      %s136 = sphi 0, %s136
      %s138 = sphi 0, %s136
      %s139 = sphi 0, %s138
      %s153 = sphi 0, %s139
      %s159 = sphi 0, %s161
      %s162 = sphi 0, %s159
      %s163 = sphi 0, %s162
      %s179 = sphi 0, %s163
    $region4: #{tpu_custom_call.1} parent=1 // loop_header_branch
      %21 = sbr.rel (%p19) target = $region8
    $region5: #{tpu_custom_call.1} parent=1 // loop_body
      %s23 = ssub.s32 %s18, 1
      %s24 = ssub.s32 %s18, 2
      %s25 = sadd.s32 %s18, 1
      %s26 = ssub.s32 %s18, %s25
      %p27 = scmp.eq.s32.totalorder %s26, 0
      %s29 = sadd.s32 %s28, 1
      %s30 = scalar_select %p27, %s28, %s29
      %p33 = pneg %p27
      %p34 = scmp.eq.s32.totalorder %s18, 1
      %p35 = por %p33, %p34
      %p36 = scmp.ne.s32.totalorder %s28, %s31
      %p37 = scmp.eq.s32.totalorder %s18, 0
      %p38 = por %p36, %p37
      %p39 = scmp.ne.s32.totalorder %s28, %s31
      %p40 = scmp.eq.s32.totalorder %s23, 1
      %p41 = por %p39, %p40
      %p42 = scmp.ne.s32.totalorder %s31, %s32
      %p43 = scmp.eq.s32.totalorder %s23, 0
      %p44 = por %p42, %p43
      %p45 = scmp.ne.s32.totalorder %s31, %s32
      %p46 = scmp.eq.s32.totalorder %s24, 1
      %p47 = por %p45, %p46
      %p49 = scmp.ne.s32.totalorder %s32, %s48
      %p50 = scmp.eq.s32.totalorder %s24, 0
      %p51 = por %p49, %p50
      %s53 = sadd.s32 %s52, 1
      %p56 = scmp.eq.s32.totalorder %s18, 1
      %p57 = scmp.ne.s32.totalorder %s52, %s54
      %p58 = scmp.eq.s32.totalorder %s18, 0
      %p59 = por %p57, %p58
      %p60 = scmp.ne.s32.totalorder %s52, %s54
      %p61 = scmp.eq.s32.totalorder %s23, 1
      %p62 = por %p60, %p61
      %p63 = scmp.ne.s32.totalorder %s54, %s55
      %p64 = scmp.eq.s32.totalorder %s23, 0
      %p65 = por %p63, %p64
      %p66 = scmp.ne.s32.totalorder %s54, %s55
      %p67 = scmp.eq.s32.totalorder %s24, 1
      %p68 = por %p66, %p67
      %p70 = scmp.ne.s32.totalorder %s55, %s69
      %p71 = scmp.eq.s32.totalorder %s24, 0
      %p72 = por %p70, %p71
      %s74 = sadd.s32 %s73, 1
      %p77 = scmp.eq.s32.totalorder %s18, 1
      %p78 = scmp.ne.s32.totalorder %s73, %s75
      %p79 = scmp.eq.s32.totalorder %s18, 0
      %p80 = por %p78, %p79
      %p81 = scmp.ne.s32.totalorder %s73, %s75
      %p82 = scmp.eq.s32.totalorder %s23, 1
      %p83 = por %p81, %p82
      %p84 = scmp.ne.s32.totalorder %s75, %s76
      %p85 = scmp.eq.s32.totalorder %s23, 0
      %p86 = por %p84, %p85
      %p87 = scmp.ne.s32.totalorder %s75, %s76
      %p88 = scmp.eq.s32.totalorder %s24, 1
      %p89 = por %p87, %p88
      %p91 = scmp.ne.s32.totalorder %s76, %s90
      %p92 = scmp.eq.s32.totalorder %s24, 0
      %p93 = por %p91, %p92
      %s95 = sadd.s32 %s94, 1
      %p98 = scmp.eq.s32.totalorder %s18, 1
      %p99 = scmp.ne.s32.totalorder %s94, %s96
      %p100 = scmp.eq.s32.totalorder %s18, 0
      %p101 = por %p99, %p100
      %p102 = scmp.ne.s32.totalorder %s94, %s96
      %p103 = scmp.eq.s32.totalorder %s23, 1
      %p104 = por %p102, %p103
      %p105 = scmp.ne.s32.totalorder %s96, %s97
      %p106 = scmp.eq.s32.totalorder %s23, 0
      %p107 = por %p105, %p106
      %p108 = scmp.ne.s32.totalorder %s96, %s97
      %p109 = scmp.eq.s32.totalorder %s24, 1
      %p110 = por %p108, %p109
      %p112 = scmp.ne.s32.totalorder %s97, %s111
      %p113 = scmp.eq.s32.totalorder %s24, 0
      %p114 = por %p112, %p113
      %s116 = sadd.s32 %s115, 1
      %p119 = scmp.eq.s32.totalorder %s18, 1
      %p120 = scmp.ne.s32.totalorder %s115, %s117
      %p121 = scmp.eq.s32.totalorder %s18, 0
      %p122 = por %p120, %p121
      %p123 = scmp.ne.s32.totalorder %s115, %s117
      %p124 = scmp.eq.s32.totalorder %s23, 1
      %p125 = por %p123, %p124
      %p126 = scmp.ne.s32.totalorder %s117, %s118
      %p127 = scmp.eq.s32.totalorder %s23, 0
      %p128 = por %p126, %p127
      %p129 = scmp.ne.s32.totalorder %s117, %s118
      %p130 = scmp.eq.s32.totalorder %s24, 1
      %p131 = por %p129, %p130
      %p133 = scmp.ne.s32.totalorder %s118, %s132
      %p134 = scmp.eq.s32.totalorder %s24, 0
      %p135 = por %p133, %p134
      %s137 = sadd.s32 %s136, 1
      %p140 = scmp.eq.s32.totalorder %s18, 1
      %p141 = scmp.ne.s32.totalorder %s136, %s138
      %p142 = scmp.eq.s32.totalorder %s18, 0
      %p143 = por %p141, %p142
      %p144 = scmp.ne.s32.totalorder %s136, %s138
      %p145 = scmp.eq.s32.totalorder %s23, 1
      %p146 = por %p144, %p145
      %p147 = scmp.ne.s32.totalorder %s138, %s139
      %p148 = scmp.eq.s32.totalorder %s23, 0
      %p149 = por %p147, %p148
      %p150 = scmp.ne.s32.totalorder %s138, %s139
      %p151 = scmp.eq.s32.totalorder %s24, 1
      %p152 = por %p150, %p151
      %p154 = scmp.ne.s32.totalorder %s139, %s153
      %p155 = scmp.eq.s32.totalorder %s24, 0
      %p156 = por %p154, %p155
      %s157 = ssub.s32 %s18, %s25
      %p158 = scmp.eq.s32.totalorder %s157, 0
      %s160 = sadd.s32 %s159, 1
      %s161 = scalar_select %p158, %s159, %s160
      %p164 = pneg %p158
      %p165 = scmp.eq.s32.totalorder %s18, 1
      %p166 = por %p164, %p165
      %p167 = scmp.ne.s32.totalorder %s159, %s162
      %p168 = scmp.eq.s32.totalorder %s18, 0
      %p169 = por %p167, %p168
      %p170 = scmp.ne.s32.totalorder %s159, %s162
      %p171 = scmp.eq.s32.totalorder %s23, 1
      %p172 = por %p170, %p171
      %p173 = scmp.ne.s32.totalorder %s162, %s163
      %p174 = scmp.eq.s32.totalorder %s23, 0
      %p175 = por %p173, %p174
      %p176 = scmp.ne.s32.totalorder %s162, %s163
      %p177 = scmp.eq.s32.totalorder %s24, 1
      %p178 = por %p176, %p177
      %p180 = scmp.ne.s32.totalorder %s163, %s179
      %p181 = scmp.eq.s32.totalorder %s24, 0
      %p182 = por %p180, %p181
      %p183 = scmp.le.s32.totalorder 1, %s18
      %p184 = scmp.lt.s32.totalorder %s18, 3
      %p185 = pnand %p183, %p184
      %p186 = pneg %p185
      // Predicated region
      $region9: #{tpu_custom_call.1} parent=5 // pred_check
        _
      $region10: #{tpu_custom_call.1} parent=5 // pred_check_branch
        %188 = sbr.rel (%p185) target = $region12
      $region11: #{tpu_custom_call.1} parent=5 // pred_region
        %s189 = ssub.s32 %s18, 1
        // Predicated region
        $region13: #{tpu_custom_call.1} parent=11 // pred_check
          %p190 = pneg %p65
        $region14: #{tpu_custom_call.1} parent=11 // pred_check_branch
          %192 = sbr.rel (%p190) target = $region16
        $region15: #{tpu_custom_call.1} parent=11 // pred_region
          _
        $region16: #{tpu_custom_call.1} parent=11 // pred_fallthru
          _
        // Predicated region
        $region17: #{tpu_custom_call.1} parent=11 // pred_check
          %p193 = pneg %p86
        $region18: #{tpu_custom_call.1} parent=11 // pred_check_branch
          %195 = sbr.rel (%p193) target = $region20
        $region19: #{tpu_custom_call.1} parent=11 // pred_region
          _
        $region20: #{tpu_custom_call.1} parent=11 // pred_fallthru
          _
        // Predicated region
        $region21: #{tpu_custom_call.1} parent=11 // pred_check
          %p196 = pneg %p107
        $region22: #{tpu_custom_call.1} parent=11 // pred_check_branch
          %198 = sbr.rel (%p196) target = $region24
        $region23: #{tpu_custom_call.1} parent=11 // pred_region
          _
        $region24: #{tpu_custom_call.1} parent=11 // pred_fallthru
          _
        // Predicated region
        $region25: #{tpu_custom_call.1} parent=11 // pred_check
          %p199 = pneg %p128
        $region26: #{tpu_custom_call.1} parent=11 // pred_check_branch
          %201 = sbr.rel (%p199) target = $region28
        $region27: #{tpu_custom_call.1} parent=11 // pred_region
          _
        $region28: #{tpu_custom_call.1} parent=11 // pred_fallthru
          _
        // Predicated region
        $region29: #{tpu_custom_call.1} parent=11 // pred_check
          %p202 = pneg %p149
        $region30: #{tpu_custom_call.1} parent=11 // pred_check_branch
          %204 = sbr.rel (%p202) target = $region32
        $region31: #{tpu_custom_call.1} parent=11 // pred_region
          _
        $region32: #{tpu_custom_call.1} parent=11 // pred_fallthru
          _
      $region12: #{tpu_custom_call.1} parent=5 // pred_fallthru
        _
      %p205 = scmp.lt.s32.totalorder %s18, 2
      // Predicated region
      $region33: #{tpu_custom_call.1} parent=5 // pred_check
        %p206 = pneg %p205
      $region34: #{tpu_custom_call.1} parent=5 // pred_check_branch
        %208 = sbr.rel (%p206) target = $region36
      $region35: #{tpu_custom_call.1} parent=5 // pred_region
        // Predicated region
        $region37: #{tpu_custom_call.1} parent=35 // pred_check
          %p209 = pneg %p38
        $region38: #{tpu_custom_call.1} parent=35 // pred_check_branch
          %211 = sbr.rel (%p209) target = $region40
        $region39: #{tpu_custom_call.1} parent=35 // pred_region
          %s212 = sand.u32 %s28, 1
          %s213 = scalar_lea.sflag [#allocation3], %s212
          %s214 = sand.u32 %s28, 1
          %s215 = smul.addr %s214, 64
          %s216 = scalar_lea.vmem [#allocation2], %s215
          %s218 = ssub.s32 1024, 1024
          %219 = vsyncadd %s213, %s218
          %s220 = smul.addr %s18, 8
          %s221 = smul.addr %s220, 128
          %s222 = scalar_lea.hbm %s0, %s221
          %s223 = sshll.u32 %s216, 4
          %s224 = int_to_ptr.vmem [resolvable:$true] %s223
          %229 = dma.hbm_to_vmem [thread:$0]  %s222, 1024, %s224, %s213, 256, 256, 16
        $region40: #{tpu_custom_call.1} parent=35 // pred_fallthru
          _
      $region36: #{tpu_custom_call.1} parent=5 // pred_fallthru
        _
      %p230 = scmp.le.s32.totalorder 1, %s18
      %p231 = scmp.lt.s32.totalorder %s18, 3
      %p232 = pnand %p230, %p231
      %p233 = pneg %p232
      // Predicated region
      $region41: #{tpu_custom_call.1} parent=5 // pred_check
        _
      $region42: #{tpu_custom_call.1} parent=5 // pred_check_branch
        %235 = sbr.rel (%p232) target = $region44
      $region43: #{tpu_custom_call.1} parent=5 // pred_region
        %s236 = ssub.s32 %s18, 1
        %s237 = sand.u32 %s31, 1
        %s238 = scalar_lea.sflag [#allocation3], %s237
        %s239 = sand.u32 %s31, 1
        %s240 = smul.addr %s239, 64
        %s241 = scalar_lea.vmem [#allocation2], %s240
        // Predicated region
        $region45: #{tpu_custom_call.1} parent=43 // pred_check
          %p242 = pneg %p44
        $region46: #{tpu_custom_call.1} parent=43 // pred_check_branch
          %244 = sbr.rel (%p242) target = $region48
        $region47: #{tpu_custom_call.1} parent=43 // pred_region
          %245 = dma.done %s238, 1024
        $region48: #{tpu_custom_call.1} parent=43 // pred_fallthru
          _
        %s246 = sand.u32 %s31, 1
        %s247 = scalar_lea.sflag [#allocation3], %s246
        %s248 = sand.u32 %s31, 1
        %s249 = smul.addr %s248, 64
        %s250 = scalar_lea.vmem [#allocation2], %s249
        %p251 = pneg %p44
        %p252 = pneg %p41
        %p253 = pneg %p65
        %p254 = pneg %p62
        %p255 = pneg %p86
        %p256 = pneg %p83
        %p257 = pneg %p107
        %p258 = pneg %p104
        %p259 = pneg %p128
        %p260 = pneg %p125
        %p261 = pneg %p149
        %p262 = pneg %p146
        %p263 = pneg %p175
        %p264 = pneg %p172
        %s265 = sand.u32 %s162, 1
        %s266 = scalar_lea.sflag [#allocation4], %s265
        %s267 = sand.u32 %s162, 1
        %s268 = smul.addr %s267, 64
        %s269 = scalar_lea.vmem [#allocation5], %s268
        %v270 = vld [vmem:[%s241] sm:$0xff]
        %v271 = vld [vmem:[%s241 + $0x8] sm:$0xff]
        %v272 = vld [vmem:[%s241 + $0x10] sm:$0xff]
        %v273 = vld [vmem:[%s241 + $0x18] sm:$0xff]
        %v274 = vld [vmem:[%s241 + $0x20] sm:$0xff]
        %v275 = vld [vmem:[%s241 + $0x28] sm:$0xff]
        %v276 = vld [vmem:[%s241 + $0x30] sm:$0xff]
        %v277 = vld [vmem:[%s241 + $0x38] sm:$0xff]
        %v278 = vld [vmem:[%s1] sm:$0x77]
        %279 = vrot.lane.b32.xlu0 %v270, 127
        %v280 = vpop.permute.xlu0 %279
        %281 = vrot.lane.b32.xlu0 %v272, 127
        %v282 = vpop.permute.xlu0 %281
        %283 = vrot.lane.b32.xlu0 %v274, 127
        %v284 = vpop.permute.xlu0 %283
        %285 = vrot.lane.b32.xlu0 %v276, 127
        %v286 = vpop.permute.xlu0 %285
        %287 = vrot.lane.b32.xlu0 %v271, 127
        %v288 = vpop.permute.xlu0 %287
        %289 = vrot.lane.b32.xlu0 %v273, 127
        %v290 = vpop.permute.xlu0 %289
        %291 = vrot.lane.b32.xlu0 %v275, 127
        %v292 = vpop.permute.xlu0 %291
        %293 = vrot.lane.b32.xlu0 %v277, 127
        %v294 = vpop.permute.xlu0 %293
        %v295 = vlaneseq
        %v296 = vand.u32 %v295, 127
        %vm297 = vcmp.lt.s32.totalorder %v296, 127
        %v298 = vsel %vm297, %v280, %v288
        %v299 = vsel %vm297, %v282, %v290
        %v300 = vsel %vm297, %v284, %v292
        %v301 = vsel %vm297, %v286, %v294
        %v302 = vsel %vm297, %v288, %v280
        %v303 = vsel %vm297, %v290, %v282
        %v304 = vsel %vm297, %v292, %v284
        %v305 = vsel %vm297, %v294, %v286
        %v306 = vadd.f32 %v270, %v298
        %v307 = vadd.f32 %v271, %v302
        %v308 = vadd.f32 %v272, %v299
        %v309 = vadd.f32 %v273, %v303
        %v310 = vadd.f32 %v274, %v300
        %v311 = vadd.f32 %v275, %v304
        %v312 = vadd.f32 %v276, %v301
        %v313 = vadd.f32 %v277, %v305
        %314 = vrot.lane.b32.xlu0 %v306, 112
        %v315 = vpop.permute.xlu0 %314
        %316 = vrot.lane.b32.xlu0 %v308, 112
        %v317 = vpop.permute.xlu0 %316
        %318 = vrot.lane.b32.xlu0 %v310, 112
        %v319 = vpop.permute.xlu0 %318
        %320 = vrot.lane.b32.xlu0 %v312, 112
        %v321 = vpop.permute.xlu0 %320
        %322 = vrot.lane.b32.xlu0 %v307, 112
        %v323 = vpop.permute.xlu0 %322
        %324 = vrot.lane.b32.xlu0 %v309, 112
        %v325 = vpop.permute.xlu0 %324
        %326 = vrot.lane.b32.xlu0 %v311, 112
        %v327 = vpop.permute.xlu0 %326
        %328 = vrot.lane.b32.xlu0 %v313, 112
        %v329 = vpop.permute.xlu0 %328
        %vm330 = vcmp.lt.s32.totalorder %v296, 112
        %v331 = vsel %vm330, %v315, %v323
        %v332 = vsel %vm330, %v317, %v325
        %v333 = vsel %vm330, %v319, %v327
        %v334 = vsel %vm330, %v321, %v329
        %v335 = vsel %vm330, %v323, %v315
        %v336 = vsel %vm330, %v325, %v317
        %v337 = vsel %vm330, %v327, %v319
        %v338 = vsel %vm330, %v329, %v321
        %v339 = vadd.f32 %v306, %v331
        %v340 = vadd.f32 %v307, %v335
        %v341 = vadd.f32 %v308, %v332
        %v342 = vadd.f32 %v309, %v336
        %v343 = vadd.f32 %v310, %v333
        %v344 = vadd.f32 %v311, %v337
        %v345 = vadd.f32 %v312, %v334
        %v346 = vadd.f32 %v313, %v338
        %v348 = vlaneseq
        %v349 = vshrl.u32 %v348, 7
        %v350 = vsub.s32 0, %v349
        %v351 = vrot.slane %v278, %v350
        %v352 = vlaneseq
        %v353 = vshrl.u32 %v352, 7
        %v354 = vsub.s32 4, %v353
        %v355 = vrot.slane %v278, %v354
        %v358 = vlaneseq
        %v359 = vshrl.u32 %v358, 7
        %v360 = vsub.s32 0, %v359
        %v361 = vrot.slane %v351, %v360
        %v362 = vlaneseq
        %v363 = vshrl.u32 %v362, 7
        %v364 = vsub.s32 0, %v363
        %v365 = vrot.slane %v355, %v364
        %v366 = vadd.f32 %v339, %v361
        %v367 = vadd.f32 %v340, %v365
        %v368 = vadd.f32 %v341, %v361
        %v369 = vadd.f32 %v342, %v365
        %v370 = vadd.f32 %v343, %v361
        %v371 = vadd.f32 %v344, %v365
        %v372 = vadd.f32 %v345, %v361
        %v373 = vadd.f32 %v346, %v365
        %v374 = vmax.f32 %v366, %v367
        %375 = vmax.xlane.f32.xlu0 %v374
        %v376 = vpop.xlane.xlu0 %375
        %v377 = vmax.f32 %v368, %v369
        %378 = vmax.xlane.f32.xlu0 %v377
        %v379 = vpop.xlane.xlu0 %378
        %v380 = vmax.f32 %v370, %v371
        %381 = vmax.xlane.f32.xlu0 %v380
        %v382 = vpop.xlane.xlu0 %381
        %v383 = vmax.f32 %v372, %v373
        %384 = vmax.xlane.f32.xlu0 %v383
        %v385 = vpop.xlane.xlu0 %384
        %v386 = vmul.f32 %v376, 0.25
        %v387 = vmul.f32 %v379, 0.25
        %v388 = vmul.f32 %v382, 0.25
        %v389 = vmul.f32 %v385, 0.25
        %390 = vrot.lane.b32.xlu0 %v339, 126
        %v391 = vpop.permute.xlu0 %390
        %392 = vrot.lane.b32.xlu0 %v341, 126
        %v393 = vpop.permute.xlu0 %392
        %394 = vrot.lane.b32.xlu0 %v343, 126
        %v395 = vpop.permute.xlu0 %394
        %396 = vrot.lane.b32.xlu0 %v345, 126
        %v397 = vpop.permute.xlu0 %396
        %398 = vrot.lane.b32.xlu0 %v340, 126
        %v399 = vpop.permute.xlu0 %398
        %400 = vrot.lane.b32.xlu0 %v342, 126
        %v401 = vpop.permute.xlu0 %400
        %402 = vrot.lane.b32.xlu0 %v344, 126
        %v403 = vpop.permute.xlu0 %402
        %404 = vrot.lane.b32.xlu0 %v346, 126
        %v405 = vpop.permute.xlu0 %404
        %vm406 = vcmp.lt.s32.totalorder %v296, 126
        %v407 = vsel %vm406, %v391, %v399
        %v408 = vsel %vm406, %v393, %v401
        %v409 = vsel %vm406, %v395, %v403
        %v410 = vsel %vm406, %v397, %v405
        %v411 = vsel %vm406, %v399, %v391
        %v412 = vsel %vm406, %v401, %v393
        %v413 = vsel %vm406, %v403, %v395
        %v414 = vsel %vm406, %v405, %v397
        %v415 = vadd.f32 %v339, %v407
        %v416 = vadd.f32 %v340, %v411
        %v417 = vadd.f32 %v341, %v408
        %v418 = vadd.f32 %v342, %v412
        %v419 = vadd.f32 %v343, %v409
        %v420 = vadd.f32 %v344, %v413
        %v421 = vadd.f32 %v345, %v410
        %v422 = vadd.f32 %v346, %v414
        %423 = vrot.lane.b32.xlu0 %v415, 96
        %v424 = vpop.permute.xlu0 %423
        %425 = vrot.lane.b32.xlu0 %v417, 96
        %v426 = vpop.permute.xlu0 %425
        %427 = vrot.lane.b32.xlu0 %v419, 96
        %v428 = vpop.permute.xlu0 %427
        %429 = vrot.lane.b32.xlu0 %v421, 96
        %v430 = vpop.permute.xlu0 %429
        %431 = vrot.lane.b32.xlu0 %v416, 96
        %v432 = vpop.permute.xlu0 %431
        %433 = vrot.lane.b32.xlu0 %v418, 96
        %v434 = vpop.permute.xlu0 %433
        %435 = vrot.lane.b32.xlu0 %v420, 96
        %v436 = vpop.permute.xlu0 %435
        %437 = vrot.lane.b32.xlu0 %v422, 96
        %v438 = vpop.permute.xlu0 %437
        %vm439 = vcmp.lt.s32.totalorder %v296, 96
        %v440 = vsel %vm439, %v424, %v432
        %v441 = vsel %vm439, %v426, %v434
        %v442 = vsel %vm439, %v428, %v436
        %v443 = vsel %vm439, %v430, %v438
        %v444 = vsel %vm439, %v432, %v424
        %v445 = vsel %vm439, %v434, %v426
        %v446 = vsel %vm439, %v436, %v428
        %v447 = vsel %vm439, %v438, %v430
        %v448 = vadd.f32 %v415, %v440
        %v449 = vadd.f32 %v416, %v444
        %v450 = vadd.f32 %v417, %v441
        %v451 = vadd.f32 %v418, %v445
        %v452 = vadd.f32 %v419, %v442
        %v453 = vadd.f32 %v420, %v446
        %v454 = vadd.f32 %v421, %v443
        %v455 = vadd.f32 %v422, %v447
        %v456 = vlaneseq
        %v457 = vshrl.u32 %v456, 7
        %v458 = vsub.s32 1, %v457
        %v459 = vrot.slane %v278, %v458
        %v460 = vlaneseq
        %v461 = vshrl.u32 %v460, 7
        %v462 = vsub.s32 5, %v461
        %v463 = vrot.slane %v278, %v462
        %v466 = vlaneseq
        %v467 = vshrl.u32 %v466, 7
        %v468 = vsub.s32 1, %v467
        %v469 = vrot.slane %v459, %v468
        %v470 = vlaneseq
        %v471 = vshrl.u32 %v470, 7
        %v472 = vsub.s32 1, %v471
        %v473 = vrot.slane %v463, %v472
        %v474 = vadd.f32 %v448, %v469
        %v475 = vadd.f32 %v449, %v473
        %v476 = vadd.f32 %v450, %v469
        %v477 = vadd.f32 %v451, %v473
        %v478 = vadd.f32 %v452, %v469
        %v479 = vadd.f32 %v453, %v473
        %v480 = vadd.f32 %v454, %v469
        %v481 = vadd.f32 %v455, %v473
        %v482 = vmax.f32 %v474, %v475
        %483 = vmax.xlane.f32.xlu0 %v482
        %v484 = vpop.xlane.xlu0 %483
        %v485 = vmax.f32 %v476, %v477
        %486 = vmax.xlane.f32.xlu0 %v485
        %v487 = vpop.xlane.xlu0 %486
        %v488 = vmax.f32 %v478, %v479
        %489 = vmax.xlane.f32.xlu0 %v488
        %v490 = vpop.xlane.xlu0 %489
        %v491 = vmax.f32 %v480, %v481
        %492 = vmax.xlane.f32.xlu0 %v491
        %v493 = vpop.xlane.xlu0 %492
        %v494 = vmul.f32 %v484, 0.0625
        %v495 = vmul.f32 %v487, 0.0625
        %v496 = vmul.f32 %v490, 0.0625
        %v497 = vmul.f32 %v493, 0.0625
        %498 = vrot.lane.b32.xlu0 %v448, 124
        %v499 = vpop.permute.xlu0 %498
        %500 = vrot.lane.b32.xlu0 %v450, 124
        %v501 = vpop.permute.xlu0 %500
        %502 = vrot.lane.b32.xlu0 %v452, 124
        %v503 = vpop.permute.xlu0 %502
        %504 = vrot.lane.b32.xlu0 %v454, 124
        %v505 = vpop.permute.xlu0 %504
        %506 = vrot.lane.b32.xlu0 %v449, 124
        %v507 = vpop.permute.xlu0 %506
        %508 = vrot.lane.b32.xlu0 %v451, 124
        %v509 = vpop.permute.xlu0 %508
        %510 = vrot.lane.b32.xlu0 %v453, 124
        %v511 = vpop.permute.xlu0 %510
        %512 = vrot.lane.b32.xlu0 %v455, 124
        %v513 = vpop.permute.xlu0 %512
        %vm514 = vcmp.lt.s32.totalorder %v296, 124
        %v515 = vsel %vm514, %v499, %v507
        %v516 = vsel %vm514, %v501, %v509
        %v517 = vsel %vm514, %v503, %v511
        %v518 = vsel %vm514, %v505, %v513
        %v519 = vsel %vm514, %v507, %v499
        %v520 = vsel %vm514, %v509, %v501
        %v521 = vsel %vm514, %v511, %v503
        %v522 = vsel %vm514, %v513, %v505
        %v523 = vadd.f32 %v448, %v515
        %v524 = vadd.f32 %v449, %v519
        %v525 = vadd.f32 %v450, %v516
        %v526 = vadd.f32 %v451, %v520
        %v527 = vadd.f32 %v452, %v517
        %v528 = vadd.f32 %v453, %v521
        %v529 = vadd.f32 %v454, %v518
        %v530 = vadd.f32 %v455, %v522
        %531 = vrot.lane.b32.xlu0 %v523, 64
        %v532 = vpop.permute.xlu0 %531
        %533 = vrot.lane.b32.xlu0 %v525, 64
        %v534 = vpop.permute.xlu0 %533
        %535 = vrot.lane.b32.xlu0 %v527, 64
        %v536 = vpop.permute.xlu0 %535
        %537 = vrot.lane.b32.xlu0 %v529, 64
        %v538 = vpop.permute.xlu0 %537
        %539 = vrot.lane.b32.xlu0 %v524, 64
        %v540 = vpop.permute.xlu0 %539
        %541 = vrot.lane.b32.xlu0 %v526, 64
        %v542 = vpop.permute.xlu0 %541
        %543 = vrot.lane.b32.xlu0 %v528, 64
        %v544 = vpop.permute.xlu0 %543
        %545 = vrot.lane.b32.xlu0 %v530, 64
        %v546 = vpop.permute.xlu0 %545
        %vm547 = vcmp.lt.s32.totalorder %v296, 64
        %v548 = vsel %vm547, %v532, %v540
        %v549 = vsel %vm547, %v534, %v542
        %v550 = vsel %vm547, %v536, %v544
        %v551 = vsel %vm547, %v538, %v546
        %v552 = vsel %vm547, %v540, %v532
        %v553 = vsel %vm547, %v542, %v534
        %v554 = vsel %vm547, %v544, %v536
        %v555 = vsel %vm547, %v546, %v538
        %v556 = vadd.f32 %v523, %v548
        %v557 = vadd.f32 %v524, %v552
        %v558 = vadd.f32 %v525, %v549
        %v559 = vadd.f32 %v526, %v553
        %v560 = vadd.f32 %v527, %v550
        %v561 = vadd.f32 %v528, %v554
        %v562 = vadd.f32 %v529, %v551
        %v563 = vadd.f32 %v530, %v555
        %v564 = vlaneseq
        %v565 = vshrl.u32 %v564, 7
        %v566 = vsub.s32 2, %v565
        %v567 = vrot.slane %v278, %v566
        %v568 = vlaneseq
        %v569 = vshrl.u32 %v568, 7
        %v570 = vsub.s32 6, %v569
        %v571 = vrot.slane %v278, %v570
        %v574 = vlaneseq
        %v575 = vshrl.u32 %v574, 7
        %v576 = vsub.s32 2, %v575
        %v577 = vrot.slane %v567, %v576
        %v578 = vlaneseq
        %v579 = vshrl.u32 %v578, 7
        %v580 = vsub.s32 2, %v579
        %v581 = vrot.slane %v571, %v580
        %v582 = vadd.f32 %v556, %v577
        %v583 = vadd.f32 %v557, %v581
        %v584 = vadd.f32 %v558, %v577
        %v585 = vadd.f32 %v559, %v581
        %v586 = vadd.f32 %v560, %v577
        %v587 = vadd.f32 %v561, %v581
        %v588 = vadd.f32 %v562, %v577
        %v589 = vadd.f32 %v563, %v581
        %v590 = vmax.f32 %v582, %v583
        %591 = vmax.xlane.f32.xlu0 %v590
        %v592 = vpop.xlane.xlu0 %591
        %v593 = vmax.f32 %v584, %v585
        %594 = vmax.xlane.f32.xlu0 %v593
        %v595 = vpop.xlane.xlu0 %594
        %v596 = vmax.f32 %v586, %v587
        %597 = vmax.xlane.f32.xlu0 %v596
        %v598 = vpop.xlane.xlu0 %597
        %v599 = vmax.f32 %v588, %v589
        %600 = vmax.xlane.f32.xlu0 %v599
        %v601 = vpop.xlane.xlu0 %600
        %v602 = vmul.f32 %v592, 0.015625
        %v603 = vmul.f32 %v595, 0.015625
        %v604 = vmul.f32 %v598, 0.015625
        %v605 = vmul.f32 %v601, 0.015625
        %v606 = vadd.f32 %v270, %v271
        %607 = vadd.xlane.f32.xlu0 %v606
        %v608 = vpop.xlane.xlu0 %607
        %v609 = vadd.f32 %v272, %v273
        %610 = vadd.xlane.f32.xlu0 %v609
        %v611 = vpop.xlane.xlu0 %610
        %v612 = vadd.f32 %v274, %v275
        %613 = vadd.xlane.f32.xlu0 %v612
        %v614 = vpop.xlane.xlu0 %613
        %v615 = vadd.f32 %v276, %v277
        %616 = vadd.xlane.f32.xlu0 %v615
        %v617 = vpop.xlane.xlu0 %616
        %v618 = vrcp.pop 256.0
        %v619 = vmul.f32 %v608, %v618
        %v620 = vmul.f32 %v611, %v618
        %v621 = vmul.f32 %v614, %v618
        %v622 = vmul.f32 %v617, %v618
        %v623 = vmax.f32 %v270, %v271
        %624 = vmax.xlane.f32.xlu0 %v623
        %v625 = vpop.xlane.xlu0 %624
        %v626 = vmax.f32 %v272, %v273
        %627 = vmax.xlane.f32.xlu0 %v626
        %v628 = vpop.xlane.xlu0 %627
        %v629 = vmax.f32 %v274, %v275
        %630 = vmax.xlane.f32.xlu0 %v629
        %v631 = vpop.xlane.xlu0 %630
        %v632 = vmax.f32 %v276, %v277
        %633 = vmax.xlane.f32.xlu0 %v632
        %v634 = vpop.xlane.xlu0 %633
        %v639 = vlaneseq
        %v640 = vshrl.u32 %v639, 7
        %v641 = vsub.s32 %v296, %v640
        %v642 = vrot.slane %v619, %v641
        %v643 = vadd.s32 %v296, 4294967288
        %v644 = vlaneseq
        %v645 = vshrl.u32 %v644, 7
        %v646 = vsub.s32 %v643, %v645
        %v647 = vrot.slane %v620, %v646
        %vm648 = vcmask 130112
        %v649 = vsel %vm648, %v647, %v642
        %v650 = vadd.s32 %v296, 4294967280
        %v651 = vlaneseq
        %v652 = vshrl.u32 %v651, 7
        %v653 = vsub.s32 %v650, %v652
        %v654 = vrot.slane %v621, %v653
        %vm655 = vcmask 195712
        %v656 = vsel %vm655, %v654, %v649
        %v657 = vadd.s32 %v296, 4294967272
        %v658 = vlaneseq
        %v659 = vshrl.u32 %v658, 7
        %v660 = vsub.s32 %v657, %v659
        %v661 = vrot.slane %v622, %v660
        %vm662 = vcmask 261312
        %v663 = vsel %vm662, %v661, %v656
        %v669 = vlaneseq
        %v670 = vshrl.u32 %v669, 7
        %v671 = vsub.s32 %v296, %v670
        %v672 = vrot.slane %v386, %v671
        %v673 = vlaneseq
        %v674 = vshrl.u32 %v673, 7
        %v675 = vsub.s32 %v643, %v674
        %v676 = vrot.slane %v387, %v675
        %v677 = vsel %vm648, %v676, %v672
        %v678 = vlaneseq
        %v679 = vshrl.u32 %v678, 7
        %v680 = vsub.s32 %v650, %v679
        %v681 = vrot.slane %v388, %v680
        %v682 = vsel %vm655, %v681, %v677
        %v683 = vlaneseq
        %v684 = vshrl.u32 %v683, 7
        %v685 = vsub.s32 %v657, %v684
        %v686 = vrot.slane %v389, %v685
        %v687 = vsel %vm662, %v686, %v682
        %v693 = vlaneseq
        %v694 = vshrl.u32 %v693, 7
        %v695 = vsub.s32 %v296, %v694
        %v696 = vrot.slane %v494, %v695
        %v697 = vlaneseq
        %v698 = vshrl.u32 %v697, 7
        %v699 = vsub.s32 %v643, %v698
        %v700 = vrot.slane %v495, %v699
        %v701 = vsel %vm648, %v700, %v696
        %v702 = vlaneseq
        %v703 = vshrl.u32 %v702, 7
        %v704 = vsub.s32 %v650, %v703
        %v705 = vrot.slane %v496, %v704
        %v706 = vsel %vm655, %v705, %v701
        %v707 = vlaneseq
        %v708 = vshrl.u32 %v707, 7
        %v709 = vsub.s32 %v657, %v708
        %v710 = vrot.slane %v497, %v709
        %v711 = vsel %vm662, %v710, %v706
        %v717 = vlaneseq
        %v718 = vshrl.u32 %v717, 7
        %v719 = vsub.s32 %v296, %v718
        %v720 = vrot.slane %v602, %v719
        %v721 = vlaneseq
        %v722 = vshrl.u32 %v721, 7
        %v723 = vsub.s32 %v643, %v722
        %v724 = vrot.slane %v603, %v723
        %v725 = vsel %vm648, %v724, %v720
        %v726 = vlaneseq
        %v727 = vshrl.u32 %v726, 7
        %v728 = vsub.s32 %v650, %v727
        %v729 = vrot.slane %v604, %v728
        %v730 = vsel %vm655, %v729, %v725
        %v731 = vlaneseq
        %v732 = vshrl.u32 %v731, 7
        %v733 = vsub.s32 %v657, %v732
        %v734 = vrot.slane %v605, %v733
        %v735 = vsel %vm662, %v734, %v730
        %v741 = vlaneseq
        %v742 = vshrl.u32 %v741, 7
        %v743 = vsub.s32 %v296, %v742
        %v744 = vrot.slane %v625, %v743
        %v745 = vlaneseq
        %v746 = vshrl.u32 %v745, 7
        %v747 = vsub.s32 %v643, %v746
        %v748 = vrot.slane %v628, %v747
        %v749 = vsel %vm648, %v748, %v744
        %v750 = vlaneseq
        %v751 = vshrl.u32 %v750, 7
        %v752 = vsub.s32 %v650, %v751
        %v753 = vrot.slane %v631, %v752
        %v754 = vsel %vm655, %v753, %v749
        %v755 = vlaneseq
        %v756 = vshrl.u32 %v755, 7
        %v757 = vsub.s32 %v657, %v756
        %v758 = vrot.slane %v634, %v757
        %v759 = vsel %vm662, %v758, %v754
        %vm761 = vcmask 1040384
        %v762 = vsel %vm761, %v663, %v687
        %vm763 = vcmask 1041408
        %v764 = vsel %vm763, %v762, %v711
        %vm765 = vcmask 1042432
        %v766 = vsel %vm765, %v764, %v735
        %vm767 = vcmask 1043456
        %v768 = vsel %vm767, %v766, %v759
        %v769 = vld [vmem:[%s2] sm:$0xff]
        %v770 = vld [vmem:[%s2 + $0x8] sm:$0xff]
        %v771 = vld [vmem:[%s2 + $0x10] sm:$0xff]
        %v772 = vld [vmem:[%s2 + $0x18] sm:$0xff]
        %v773 = vld [vmem:[%s3] sm:$0x1]
        %v775 = vlaneseq
        %v776 = vshrl.u32 %v775, 7
        %v777 = vsub.s32 0, %v776
        %v778 = vrot.slane %v773, %v777
        %vm780 = vcmask 261120
        %v782 = vsel %vm780, %v768, 0
        %784 = vmatprep.subr.mxu0 0.0
        %785 = vmatpush1.msra.mxu0 %v769
        %786 = vmatprep.subr.mxu0 0.0
        %787 = vmatpush1.msra.mxu0 %v770
        %788 = vmatprep.subr.mxu0 0.0
        %789 = vmatpush1.msra.mxu0 %v771
        %790 = vmatprep.subr.mxu0 0.0
        %791 = vmatpush1.msra.mxu0 %v772
        %792 = vmatprep.subr.mxu0 0.0
        %793 = vmatpush1.msra.mxu0 0.0
        %794 = vmatprep.subr.mxu0 0.0
        %795 = vmatpush1.msra.mxu0 0.0
        %796 = vmatprep.subr.mxu0 0.0
        %797 = vmatpush1.msra.mxu0 0.0
        %798 = vmatprep.subr.mxu0 0.0
        %799 = vmatpush1.msra.mxu0 0.0
        %800 = vmatprep.subr.mxu0 0.0
        %801 = vmatpush1.msra.mxu0 0.0
        %802 = vmatprep.subr.mxu0 0.0
        %803 = vmatpush1.msra.mxu0 0.0
        %804 = vmatprep.subr.mxu0 0.0
        %805 = vmatpush1.msra.mxu0 0.0
        %806 = vmatprep.subr.mxu0 0.0
        %807 = vmatpush1.msra.mxu0 0.0
        %808 = vmatprep.subr.mxu0 0.0
        %809 = vmatpush1.msra.mxu0 0.0
        %810 = vmatprep.subr.mxu0 0.0
        %811 = vmatpush1.msra.mxu0 0.0
        %812 = vmatprep.subr.mxu0 0.0
        %813 = vmatpush1.msra.mxu0 0.0
        %814 = vmatprep.subr.mxu0 0.0
        %815 = vmatpush1.msra.mxu0 0.0
        %816 = vmatprep.subr.mxu0 0.0
        %817 = vmatpush1.msra.mxu0 0.0
        %818 = vmatprep.subr.mxu0 0.0
        %819 = vmatpush1.msra.mxu0 0.0
        %820 = vmatprep.subr.mxu0 0.0
        %821 = vmatpush1.msra.mxu0 0.0
        %822 = vmatprep.subr.mxu0 0.0
        %823 = vmatpush1.msra.mxu0 0.0
        %824 = vmatprep.subr.mxu0 0.0
        %825 = vmatpush1.msra.mxu0 0.0
        %826 = vmatprep.subr.mxu0 0.0
        %827 = vmatpush1.msra.mxu0 0.0
        %828 = vmatprep.subr.mxu0 0.0
        %829 = vmatpush1.msra.mxu0 0.0
        %830 = vmatprep.subr.mxu0 0.0
        %831 = vmatpush1.msra.mxu0 0.0
        %832 = vmatprep.subr.mxu0 0.0
        %833 = vmatpush1.msra.mxu0 0.0
        %834 = vmatprep.subr.mxu0 0.0
        %835 = vmatpush1.msra.mxu0 0.0
        %836 = vmatprep.subr.mxu0 0.0
        %837 = vmatpush1.msra.mxu0 0.0
        %838 = vmatprep.subr.mxu0 0.0
        %839 = vmatpush1.msra.mxu0 0.0
        %840 = vmatprep.subr.mxu0 0.0
        %841 = vmatpush1.msra.mxu0 0.0
        %842 = vmatprep.subr.mxu0 0.0
        %843 = vmatpush1.msra.mxu0 0.0
        %844 = vmatprep.subr.mxu0 0.0
        %845 = vmatpush1.msra.mxu0 0.0
        %846 = vmatprep.subr.mxu0 0.0
        %847 = vmatpush1.msra.mxu0 0.0
        %848 = vmatprep.mubr.f32.mxu0 0.0
        %849 = vmatmul.mubr.f32.gmra.mrb[0].mxu0 %v782
        %v850 = vpop.f32.mrb[0].mxu0
        %v851 = vadd.f32 %v778, %v850
        %v852 = vpop.f32.mrb[0].mxu0
        %853 = vdwg.mxu0
        %v854 = vmax.f32 %v851, 0.0
        %v855 = vld [vmem:[%s4] sm:$0x3]
        %v856 = vld [vmem:[%s5] sm:$0x1]
        %v858 = vlaneseq
        %v859 = vshrl.u32 %v858, 7
        %v860 = vsub.s32 0, %v859
        %v861 = vrot.slane %v856, %v860
        %vm863 = vcmask 15360
        %v865 = vsel %vm863, %v854, 0
        %v868 = vsel %vm763, %v855, 0
        %870 = vmatprep.subr.mxu0 0.0
        %871 = vmatpush1.msra.mxu0 %v868
        %872 = vmatprep.subr.mxu0 0.0
        %873 = vmatpush1.msra.mxu0 0.0
        %874 = vmatprep.subr.mxu0 0.0
        %875 = vmatpush1.msra.mxu0 0.0
        %876 = vmatprep.subr.mxu0 0.0
        %877 = vmatpush1.msra.mxu0 0.0
        %878 = vmatprep.subr.mxu0 0.0
        %879 = vmatpush1.msra.mxu0 0.0
        %880 = vmatprep.subr.mxu0 0.0
        %881 = vmatpush1.msra.mxu0 0.0
        %882 = vmatprep.subr.mxu0 0.0
        %883 = vmatpush1.msra.mxu0 0.0
        %884 = vmatprep.subr.mxu0 0.0
        %885 = vmatpush1.msra.mxu0 0.0
        %886 = vmatprep.subr.mxu0 0.0
        %887 = vmatpush1.msra.mxu0 0.0
        %888 = vmatprep.subr.mxu0 0.0
        %889 = vmatpush1.msra.mxu0 0.0
        %890 = vmatprep.subr.mxu0 0.0
        %891 = vmatpush1.msra.mxu0 0.0
        %892 = vmatprep.subr.mxu0 0.0
        %893 = vmatpush1.msra.mxu0 0.0
        %894 = vmatprep.subr.mxu0 0.0
        %895 = vmatpush1.msra.mxu0 0.0
        %896 = vmatprep.subr.mxu0 0.0
        %897 = vmatpush1.msra.mxu0 0.0
        %898 = vmatprep.subr.mxu0 0.0
        %899 = vmatpush1.msra.mxu0 0.0
        %900 = vmatprep.subr.mxu0 0.0
        %901 = vmatpush1.msra.mxu0 0.0
        %902 = vmatprep.subr.mxu0 0.0
        %903 = vmatpush1.msra.mxu0 0.0
        %904 = vmatprep.subr.mxu0 0.0
        %905 = vmatpush1.msra.mxu0 0.0
        %906 = vmatprep.subr.mxu0 0.0
        %907 = vmatpush1.msra.mxu0 0.0
        %908 = vmatprep.subr.mxu0 0.0
        %909 = vmatpush1.msra.mxu0 0.0
        %910 = vmatprep.subr.mxu0 0.0
        %911 = vmatpush1.msra.mxu0 0.0
        %912 = vmatprep.subr.mxu0 0.0
        %913 = vmatpush1.msra.mxu0 0.0
        %914 = vmatprep.subr.mxu0 0.0
        %915 = vmatpush1.msra.mxu0 0.0
        %916 = vmatprep.subr.mxu0 0.0
        %917 = vmatpush1.msra.mxu0 0.0
        %918 = vmatprep.subr.mxu0 0.0
        %919 = vmatpush1.msra.mxu0 0.0
        %920 = vmatprep.subr.mxu0 0.0
        %921 = vmatpush1.msra.mxu0 0.0
        %922 = vmatprep.subr.mxu0 0.0
        %923 = vmatpush1.msra.mxu0 0.0
        %924 = vmatprep.subr.mxu0 0.0
        %925 = vmatpush1.msra.mxu0 0.0
        %926 = vmatprep.subr.mxu0 0.0
        %927 = vmatpush1.msra.mxu0 0.0
        %928 = vmatprep.subr.mxu0 0.0
        %929 = vmatpush1.msra.mxu0 0.0
        %930 = vmatprep.subr.mxu0 0.0
        %931 = vmatpush1.msra.mxu0 0.0
        %932 = vmatprep.subr.mxu0 0.0
        %933 = vmatpush1.msra.mxu0 0.0
        %934 = vmatprep.mubr.f32.mxu0 0.0
        %935 = vmatmul.mubr.f32.gmra.mrb[0].mxu0 %v865
        %v936 = vpop.f32.mrb[0].mxu0
        %v937 = vadd.f32 %v861, %v936
        %v938 = vpop.f32.mrb[0].mxu0
        %939 = vdwg.mxu0
        %v940 = vmul.f32 %v937, 4.0
        %v942 = vrot.slane %v937, 1
        %v944 = vadd.f32 %v940, %v942
        %v945 = vrot.slane %v937, 2
        %v947 = vadd.f32 %v944, %v945
        %v948 = vrot.slane %v937, 3
        %v950 = vadd.f32 %v947, %v948
        %v951 = vrot.slane %v937, 4
        %v953 = vadd.f32 %v950, %v951
        %v954 = vxor.u32 %v953, 2147483648
        %v955 = vmul.f32 %v954, 1.442695
        %v956 = vpow.pop %v955
        %v957 = vadd.f32 %v956, 1.0
        %v958 = vrcp.pop %v957
        %v959 = vmul.f32 1.0, %v958
        %v960 = vlaneseq
        %v961 = vshrl.u32 %v960, 7
        %v962 = vsub.s32 0, %v961
        %v963 = vrot.slane %v959, %v962
        %965 = vbcast.lane.b32.xlu0 %v963, 256
        %v966 = vpop.permute.xlu0 %965
        %s968 = sor.u32 256, 8
        %969 = vbcast.lane.b32.xlu0 %v963, %s968
        %v970 = vpop.permute.xlu0 %969
        %s972 = sor.u32 256, 16
        %973 = vbcast.lane.b32.xlu0 %v963, %s972
        %v974 = vpop.permute.xlu0 %973
        %s976 = sor.u32 256, 24
        %977 = vbcast.lane.b32.xlu0 %v963, %s976
        %v978 = vpop.permute.xlu0 %977
        %v979 = vmul.f32 %v270, %v966
        %v980 = vmul.f32 %v271, %v966
        %v981 = vmul.f32 %v272, %v970
        %v982 = vmul.f32 %v273, %v970
        %v983 = vmul.f32 %v274, %v974
        %v984 = vmul.f32 %v275, %v974
        %v985 = vmul.f32 %v276, %v978
        %v986 = vmul.f32 %v277, %v978
        %987 = vst [vmem:[%s269] sm:$0xff] %v979
        %988 = vst [vmem:[%s269 + $0x8] sm:$0xff] %v980
        %989 = vst [vmem:[%s269 + $0x10] sm:$0xff] %v981
        %990 = vst [vmem:[%s269 + $0x18] sm:$0xff] %v982
        %991 = vst [vmem:[%s269 + $0x20] sm:$0xff] %v983
        %992 = vst [vmem:[%s269 + $0x28] sm:$0xff] %v984
        %993 = vst [vmem:[%s269 + $0x30] sm:$0xff] %v985
        %994 = vst [vmem:[%s269 + $0x38] sm:$0xff] %v986
        %s995 = sand.u32 %s162, 1
        %s996 = scalar_lea.sflag [#allocation4], %s995
        %s997 = sand.u32 %s162, 1
        %s998 = smul.addr %s997, 64
        %s999 = scalar_lea.vmem [#allocation5], %s998
        // Predicated region
        $region49: #{tpu_custom_call.1} parent=43 // pred_check
          %p1000 = pneg %p172
        $region50: #{tpu_custom_call.1} parent=43 // pred_check_branch
          %1002 = sbr.rel (%p1000) target = $region52
        $region51: #{tpu_custom_call.1} parent=43 // pred_region
          %s1004 = ssub.s32 1024, 1024
          %1005 = vsyncadd %s996, %s1004
          %s1006 = smul.addr %s23, 8
          %s1007 = smul.addr %s1006, 128
          %s1008 = scalar_lea.hbm %s6, %s1007
          %s1009 = sshll.u32 %s999, 4
          %s1010 = int_to_ptr.vmem [resolvable:$true] %s1009
          %1015 = dma.vmem_to_hbm [thread:$0]  %s1010, 1024, %s1008, %s996, 256, 256, 16
        $region52: #{tpu_custom_call.1} parent=43 // pred_fallthru
          _
      $region44: #{tpu_custom_call.1} parent=5 // pred_fallthru
        _
      %p1016 = scmp.le.s32.totalorder 2, %s18
      // Predicated region
      $region53: #{tpu_custom_call.1} parent=5 // pred_check
        %p1017 = pneg %p1016
      $region54: #{tpu_custom_call.1} parent=5 // pred_check_branch
        %1019 = sbr.rel (%p1017) target = $region56
      $region55: #{tpu_custom_call.1} parent=5 // pred_region
        %s1020 = ssub.s32 %s18, 2
        // Predicated region
        $region57: #{tpu_custom_call.1} parent=55 // pred_check
          %p1021 = pneg %p178
        $region58: #{tpu_custom_call.1} parent=55 // pred_check_branch
          %1023 = sbr.rel (%p1021) target = $region60
        $region59: #{tpu_custom_call.1} parent=55 // pred_region
          %s1024 = sand.u32 %s163, 1
          %s1025 = scalar_lea.sflag [#allocation4], %s1024
          %s1026 = sand.u32 %s163, 1
          %s1027 = smul.addr %s1026, 64
          %s1028 = scalar_lea.vmem [#allocation5], %s1027
          %1029 = dma.done %s1025, 1024
        $region60: #{tpu_custom_call.1} parent=55 // pred_fallthru
          _
      $region56: #{tpu_custom_call.1} parent=5 // pred_fallthru
        _
    $region6: #{tpu_custom_call.1} parent=1 // loop_footer
      %s22 = sadd.s32 1, %s18
    $region7: #{tpu_custom_call.1} parent=1 // loop_footer_branch
      %17 = sbr.rel target = $region3
    $region8: #{tpu_custom_call.1} parent=1 // loop_exit
      _
    %1030 = vsyncpa [#allocation3], 1
    %s1031 = scalar_lea.sflag [#allocation3], 1
    %1032 = vsyncpa %s1031, 1
    %1033 = vsyncpa [#allocation4], 1
    %s1034 = scalar_lea.sflag [#allocation4], 1
    %1035 = vsyncpa %s1034, 1

</llo_original>
